<compile_context>
chip_gen: v5e
topology: v5e:2x2
jax: 0.10.0
libtpu: 0.0.40
codegen_flags: <defaults>
</compile_context>

<pallas_src>
import functools

import jax
import jax.numpy as jnp
from jax.experimental import pallas as pl
from jax.experimental.pallas import tpu as pltpu


def _rmsnorm_kernel(x_ref, w_ref, o_ref, *, eps: float, sub_rows: int):
    # x_ref: (block_rows, dim), w_ref: (1, dim) f32 (resident across the grid),
    # o_ref: (block_rows, dim) in the promoted output dtype.
    w = w_ref[...]                                   # (1, dim) f32
    n_sub = x_ref.shape[0] // sub_rows               # static

    def body(c, carry):
        r = pl.multiple_of(c * sub_rows, sub_rows)
        x = x_ref[pl.ds(r, sub_rows), :].astype(jnp.float32)   # x.float()
        ms = jnp.mean(x * x, axis=-1, keepdims=True)           # mean(x^2, -1)
        inv = jax.lax.rsqrt(ms + eps)                          # rsqrt (EUP)
        # Scale + weight multiply in f32, single downcast at the store.
        o_ref[pl.ds(r, sub_rows), :] = (x * inv * w).astype(o_ref.dtype)
        return carry

    # Short fixed trip count -> unroll for LLO visibility; long loops stay
    # rolled (loop overhead is hidden under HBM stalls anyway).
    jax.lax.fori_loop(0, n_sub, body, 0, unroll=(n_sub <= 8))


def _sublane_pack(dtype) -> int:
    # Sublane packing: 8 rows for 4-byte dtypes, 16 for 2-byte, 32 for 1-byte.
    return max(8, 32 // jnp.dtype(dtype).itemsize)


def _vmem_budgets() -> tuple[int, int]:
    """(tile_budget_bytes, vmem_limit_bytes) derived from hardware VMEM."""
    try:
        cap = int(pltpu.get_tpu_info().vmem_capacity_bytes)
    except Exception:
        cap = 64 * 1024 * 1024          # conservative: v7x per-TC VMEM
    tile_budget = min(cap // 4, 24 * 1024 * 1024)   # 16 MiB v7x, 24 MiB v5e/v6e
    vmem_limit = min(cap // 2, 48 * 1024 * 1024)    # 32 MiB v7x, 48 MiB v5e/v6e
    return tile_budget, vmem_limit


def _pick_block_rows(rows: int, dim: int, in_dtype, out_dtype,
                     tile_budget_bytes: int) -> int:
    """Row-tile size: as large as the VMEM budget allows, but never so large
    that the grid collapses (min ~8 steps, even length when possible)."""
    in_size = jnp.dtype(in_dtype).itemsize
    out_size = jnp.dtype(out_dtype).itemsize
    pack = _sublane_pack(in_dtype)
    rows_up = ((rows + pack - 1) // pack) * pack

    # Pipelined footprint per row: double-buffered input + output tiles.
    per_row = dim * 2 * (in_size + out_size)
    # Reserve headroom for the in-kernel f32 sub-chunk temps (~4 MiB) and the
    # resident f32 weight row.
    usable = max(tile_budget_bytes - 4 * 1024 * 1024 - dim * 4, per_row * pack)
    br_budget = max(pack, usable // per_row)

    # Keep the grid pipelined and splittable across v7x's 2 TensorCores:
    # at least 8 steps (4 for smaller inputs), and an even number of steps.
    if rows_up >= 8 * pack:
        min_steps = 8
    elif rows_up >= 4 * pack:
        min_steps = 4
    else:
        min_steps = 1
    steps = max(min_steps, pl.cdiv(rows_up, br_budget))
    if steps > 1 and steps % 2:
        steps += 1

    br = pl.cdiv(rows_up, steps)
    br = max(pack, ((br + pack - 1) // pack) * pack)   # sublane-pack aligned
    br = min(br, rows_up)
    return int(br)


def _pick_sub_rows(block_rows: int, dim: int, pack: int) -> int:
    """Row sub-chunk so the in-kernel f32 working set stays ~<= 2 MiB and the
    sub-chunk count divides block_rows exactly."""
    if block_rows % pack != 0:
        return block_rows            # user-forced odd tile: no sub-chunking
    target_rows = max(pack, (2 * 1024 * 1024) // max(dim * 4, 1))
    if block_rows <= target_rows:
        return block_rows
    units = block_rows // pack
    want = max(1, target_rows // pack)
    for d in range(min(want, units), 0, -1):
        if units % d == 0:
            return d * pack
    return pack


def rmsnorm(x: jax.Array, weight: jax.Array, eps: float = 1e-6,
            block_rows: int | None = None) -> jax.Array:
    """RMSNorm over the last axis of `x`, scaled by `weight` (shape (dim,))."""
    orig_shape = x.shape
    dim = orig_shape[-1]
    assert weight.shape == (dim,)

    # PyTorch: self._norm(x.float()).type_as(x) * self.weight  -> output dtype
    # follows x/weight promotion.
    out_dtype = jnp.result_type(x.dtype, weight.dtype)

    x2d = x.reshape(-1, dim)
    rows = x2d.shape[0]

    tile_budget_bytes, vmem_limit_bytes = _vmem_budgets()
    pack = _sublane_pack(x.dtype)
    if block_rows is None:
        block_rows = _pick_block_rows(rows, dim, x.dtype, out_dtype,
                                      tile_budget_bytes)
    sub_rows = _pick_sub_rows(block_rows, dim, pack)

    # Weight stays resident in f32: one (1, dim) block, same tile every step.
    w2d = weight.reshape(1, dim).astype(jnp.float32)

    # Ragged last block handled by Pallas masking -> no host-side pad/slice.
    grid = (pl.cdiv(rows, block_rows),)

    in_size = jnp.dtype(x.dtype).itemsize
    out_size = jnp.dtype(out_dtype).itemsize
    cost = pl.CostEstimate(
        flops=5 * rows * dim,                    # square, reduce, +eps, 2 muls
        transcendentals=rows,                    # rsqrt per row
        bytes_accessed=rows * dim * (in_size + out_size) + dim * 4,
    )

    # TODO(synk): for dims not a multiple of 128 run at scale, repack the lane
    # axis in the wrapper (pad dim to 128) to avoid masked partial stores.
    out = pl.pallas_call(
        functools.partial(_rmsnorm_kernel, eps=eps, sub_rows=sub_rows),
        out_shape=jax.ShapeDtypeStruct((rows, dim), out_dtype),
        grid_spec=pltpu.PrefetchScalarGridSpec(
            num_scalar_prefetch=0,
            grid=grid,
            in_specs=[
                pl.BlockSpec((block_rows, dim), lambda i: (i, 0)),
                pl.BlockSpec((1, dim), lambda i: (0, 0)),   # resident weight
            ],
            out_specs=pl.BlockSpec((block_rows, dim), lambda i: (i, 0)),
        ),
        compiler_params=pltpu.CompilerParams(
            dimension_semantics=("parallel",),   # rows shard across v7x's 2 TCs
            vmem_limit_bytes=vmem_limit_bytes,
        ),
        cost_estimate=cost,
    )(x2d, w2d)

    return out.reshape(orig_shape)


def rmsnorm_reference(x, weight, eps=1e-6):
    # Mirrors the PyTorch module: norm in f32, cast back to x.dtype, then
    # multiply by weight (with standard type promotion).
    xf = x.astype(jnp.float32)
    inv = jax.lax.rsqrt(jnp.mean(xf * xf, axis=-1, keepdims=True) + eps)
    normed = (xf * inv).astype(x.dtype)          # .type_as(x)
    return normed * weight


if __name__ == "__main__":
    key = jax.random.PRNGKey(0)

    # Test 1: small shape matching the module's forward (f32, ones weight).
    batch, seq, dim = 2, 8, 32
    x = jax.random.normal(key, (batch, seq, dim), dtype=jnp.float32)
    weight = jnp.ones((dim,), dtype=jnp.float32)   # nn.Parameter(torch.ones(dim))

    out = jax.block_until_ready(rmsnorm(x, weight, eps=1e-6))
    ref = rmsnorm_reference(x, weight, eps=1e-6)
    assert out.shape == x.shape and out.dtype == jnp.float32
    assert jnp.allclose(out, ref, atol=1e-5, rtol=1e-5)

    # Test 2: ragged row count (rows % block_rows != 0) with a non-trivial
    # weight, exercising the masked last block (no host-side pad/slice).
    k1, k2 = jax.random.split(key)
    x2 = jax.random.normal(k1, (3, 7, 256), dtype=jnp.float32)   # rows = 21
    w2 = 1.0 + 0.1 * jax.random.normal(k2, (256,), dtype=jnp.float32)
    out2 = jax.block_until_ready(rmsnorm(x2, w2, eps=1e-6, block_rows=8))
    ref2 = rmsnorm_reference(x2, w2, eps=1e-6)
    assert out2.shape == x2.shape and out2.dtype == jnp.float32
    assert jnp.allclose(out2, ref2, atol=1e-5, rtol=1e-5)

    # Test 3: bf16 activations with f32 weight; PyTorch promotion -> f32 out.
    x3 = jax.random.normal(k2, (2, 9, 256), dtype=jnp.bfloat16)  # rows = 18
    w3 = 1.0 + 0.1 * jax.random.normal(k1, (256,), dtype=jnp.float32)
    out3 = jax.block_until_ready(rmsnorm(x3, w3, eps=1e-6))
    ref3 = rmsnorm_reference(x3, w3, eps=1e-6)
    assert out3.shape == x3.shape
    assert out3.dtype == jnp.result_type(x3.dtype, w3.dtype)
    assert jnp.allclose(out3.astype(jnp.float32), ref3.astype(jnp.float32),
                        atol=2e-2, rtol=2e-2)

    # Test 4: larger shape exercising the multi-step grid + in-kernel
    # sub-chunk loop (auto-picked block_rows > sub_rows).
    x4 = jax.random.normal(k1, (4, 1024, 2048), dtype=jnp.float32)  # rows = 4096
    w4 = 1.0 + 0.05 * jax.random.normal(k2, (2048,), dtype=jnp.float32)
    out4 = jax.block_until_ready(rmsnorm(x4, w4, eps=1e-6))
    ref4 = rmsnorm_reference(x4, w4, eps=1e-6)
    assert out4.shape == x4.shape and out4.dtype == jnp.float32
    assert jnp.allclose(out4, ref4, atol=1e-5, rtol=1e-5)

    print("KERNEL_OK")
</pallas_src>

<mosaic_0001>
module attributes {stable_mosaic.version = 11 : i64} {
  func.func @_rmsnorm_kernel(%arg0: i32, %arg1: memref<16x32xf32, #tpu.memory_space<vmem>>, %arg2: memref<1x32xf32, #tpu.memory_space<vmem>>, %arg3: memref<16x32xf32, #tpu.memory_space<vmem>>) attributes {dimension_semantics = [#tpu.dimension_semantics<parallel>], iteration_bounds = array<i64: 1>, scalar_prefetch = 0 : i64, scratch_operands = 0 : i64, tpu.core_type = #tpu.core_type<tc>, window_params = [{transform_indices = @transform_0, window_bounds = array<i64: 16, 32>}, {pipeline_mode = #tpu.pipeline_mode<synchronous>, transform_indices = @transform_1, window_bounds = array<i64: 1, 32>}, {transform_indices = @transform_2, window_bounds = array<i64: 16, 32>}]} {
    %c0 = arith.constant 0 : index
    %c0_0 = arith.constant 0 : index
    %0 = vector.load %arg2[%c0, %c0_0] : memref<1x32xf32, #tpu.memory_space<vmem>>, vector<1x32xf32>
    %c0_i32 = arith.constant 0 : i32
    %c16_i32 = arith.constant 16 : i32
    %1 = arith.muli %c0_i32, %c16_i32 : i32
    %2 = tpu.assume_multiple %1, 16 : i32
    %3 = arith.index_cast %2 : i32 to index
    %c0_1 = arith.constant 0 : index
    %4 = vector.load %arg1[%3, %c0_1] : memref<16x32xf32, #tpu.memory_space<vmem>>, vector<16x32xf32>
    %5 = arith.mulf %4, %4 : vector<16x32xf32>
    %cst = arith.constant dense<0.000000e+00> : vector<16xf32>
    %6 = vector.multi_reduction <add>, %5, %cst [1] : vector<16x32xf32> to vector<16xf32>
    %7 = vector.shape_cast %6 : vector<16xf32> to vector<16x1xf32>
    %cst_2 = arith.constant 3.200000e+01 : f32
    %8 = vector.broadcast %cst_2 : f32 to vector<16x1xf32>
    %9 = arith.divf %7, %8 : vector<16x1xf32>
    %cst_3 = arith.constant 9.99999997E-7 : f32
    %10 = vector.broadcast %cst_3 : f32 to vector<16x1xf32>
    %11 = arith.addf %9, %10 : vector<16x1xf32>
    %12 = math.rsqrt %11 : vector<16x1xf32>
    %13 = vector.broadcast %12 : vector<16x1xf32> to vector<16x32xf32>
    %14 = arith.mulf %4, %13 : vector<16x32xf32>
    %15 = vector.broadcast %0 : vector<1x32xf32> to vector<16x32xf32>
    %16 = arith.mulf %14, %15 : vector<16x32xf32>
    %17 = arith.index_cast %2 : i32 to index
    %c0_4 = arith.constant 0 : index
    %18 = vector.load %arg3[%17, %c0_4] : memref<16x32xf32, #tpu.memory_space<vmem>>, vector<16x32xf32>
    tpu.vector_store %arg3[%17, %c0_4], %16 {strides = array<i32>} : memref<16x32xf32, #tpu.memory_space<vmem>>, vector<16x32xf32>,
    %c1_i32 = arith.constant 1 : i32
    return
  }
  func.func @transform_0(%arg0: i32) -> (i32, i32) {
    %c0_i32 = arith.constant 0 : i32
    %c0_i32_0 = arith.constant 0 : i32
    return %arg0, %c0_i32 : i32, i32
  }
  func.func @transform_1(%arg0: i32) -> (i32, i32) {
    %c0_i32 = arith.constant 0 : i32
    %c0_i32_0 = arith.constant 0 : i32
    %c0_i32_1 = arith.constant 0 : i32
    return %c0_i32, %c0_i32_0 : i32, i32
  }
  func.func @transform_2(%arg0: i32) -> (i32, i32) {
    %c0_i32 = arith.constant 0 : i32
    %c0_i32_0 = arith.constant 0 : i32
    return %arg0, %c0_i32 : i32, i32
  }
}

</mosaic_0001>

<llo_original>
// kernel: tpu_custom_call.1
$region0: #{tpu_custom_call.1}
  #allocation0 [shape = 'u32[]', space=smem, size = 0x4, offset = 0x4, fixed_abs, tag = 'smem constant byte address 0x4 - core index']
  #allocation1 [shape = 'u32[72,128]{1,0:T(1,128)}', space=vmem, size = 0x9000, scoped, tag = 'internal scratch']
  %s0 = inlined_call_operand.hbm [shape: f32[16,32], index: 0, kind: input, shape index: {}]
  %s1 = inlined_call_operand.hbm [shape: f32[1,32], index: 1, kind: input, shape index: {}]
  %s2 = inlined_call_operand.hbm [shape: f32[16,32], index: 2, kind: output, shape index: {}]
  %s3 = sld [smem:[#allocation0]]
  $region26: #{tpu_custom_call.1} parent=0
    _
  %s5 = ssub.s32 1, %s3
  %s6 = scalar_select 0, %s5, %s3
  $region1: #{tpu_custom_call.1} parent=0
    #allocation2 [shape = 'u8[8192]{0}', space=vmem, size = 0x2000, scoped, tag = 'input window, operand 0, single buffered']
    #allocation3 [shape = 's32[1]{0}', space=sflag, size = 0x4, scoped, tag = 'scoped memory for tpu_custom_call.1']
    #allocation4 [shape = 's32[1]{0}', space=sflag, size = 0x4, scoped, tag = 'scoped memory for tpu_custom_call.1']
    #allocation5 [shape = 'u8[512]{0}', space=vmem, size = 0x400, scoped, tag = 'input window, operand 1, single buffered']
    #allocation6 [shape = 's32[1]{0}', space=sflag, size = 0x4, scoped, tag = 'scoped memory for tpu_custom_call.1']
    #allocation7 [shape = 'u8[8192]{0}', space=vmem, size = 0x2000, scoped, tag = 'output window, operand 0, single buffered']
    %7 = vsyncpa [#allocation3], 0
    %8 = vsyncpa [#allocation6], 0
    %9 = vsyncpa [#allocation4], 0
    // Predicated region
    $region2: #{tpu_custom_call.1} parent=1 // pred_check
      _
    $region3: #{tpu_custom_call.1} parent=1 // pred_check_branch
      %11 = sbr.rel (0) target = $region5
    $region4: #{tpu_custom_call.1} parent=1 // pred_region
      %13 = vsyncadd [#allocation3], 0
      %s14 = sshll.u32 %s0, 4
      %s15 = int_to_ptr.hbm [resolvable:$true] %s14
      %s16 = sshll.u32 [#allocation2], 4
      %s17 = int_to_ptr.vmem [resolvable:$true] %s16
      %22 = dma.hbm_to_vmem [thread:$0]  %s15, 256, %s17, [#allocation3], 128, 128, 8
    $region5: #{tpu_custom_call.1} parent=1 // pred_fallthru
      _
    // Predicated region
    $region6: #{tpu_custom_call.1} parent=1 // pred_check
      _
    $region7: #{tpu_custom_call.1} parent=1 // pred_check_branch
      %24 = sbr.rel (0) target = $region9
    $region8: #{tpu_custom_call.1} parent=1 // pred_region
      %26 = vsyncadd [#allocation6], 0
      %s28 = sshll.u32 %s1, 4
      %s29 = int_to_ptr.hbm [resolvable:$true] %s28
      %s30 = sshll.u32 [#allocation5], 4
      %s31 = int_to_ptr.vmem [resolvable:$true] %s30
      %33 = dma.hbm_to_vmem [thread:$0]  %s29, 16, %s31, [#allocation6]
    $region9: #{tpu_custom_call.1} parent=1 // pred_fallthru
      _
    // Predicated region
    $region10: #{tpu_custom_call.1} parent=1 // pred_check
      _
    $region11: #{tpu_custom_call.1} parent=1 // pred_check_branch
      %35 = sbr.rel (0) target = $region13
    $region12: #{tpu_custom_call.1} parent=1 // pred_region
      %37 = dma.done [#allocation3], 256
    $region13: #{tpu_custom_call.1} parent=1 // pred_fallthru
      _
    // Predicated region
    $region14: #{tpu_custom_call.1} parent=1 // pred_check
      _
    $region15: #{tpu_custom_call.1} parent=1 // pred_check_branch
      %39 = sbr.rel (0) target = $region17
    $region16: #{tpu_custom_call.1} parent=1 // pred_region
      %41 = dma.done [#allocation6], 16
    $region17: #{tpu_custom_call.1} parent=1 // pred_fallthru
      _
    %v42 = vld [vmem:[#allocation5] sm:$0x1]
    %v43 = vld [vmem:[#allocation2] sm:$0xff]
    %v44 = vld [vmem:[#allocation2 + $0x8] sm:$0xff]
    %v45 = vmul.f32 %v43, %v43
    %v46 = vmul.f32 %v44, %v44
    %vm47 = vcmask 261120
    %v48 = vsel %vm47, %v45, 0.0
    %49 = vadd.xlane.f32.xlu0 %v48
    %v50 = vpop.xlane.xlu0 %49
    %v51 = vsel %vm47, %v46, 0.0
    %52 = vadd.xlane.f32.xlu0 %v51
    %v53 = vpop.xlane.xlu0 %52
    %v54 = vrcp.pop 32.0
    %v55 = vmul.f32 32.0, %v54
    %v56 = vsub.f32 1.0, %v55
    %v57 = vmul.f32 %v54, %v56
    %v58 = vadd.f32 %v54, %v57
    %vm59 = vweird.f32 %v54
    %v60 = vsel %vm59, %v54, %v58
    %v61 = vmul.f32 %v50, %v60
    %v62 = vmul.f32 %v53, %v60
    %v63 = vadd.f32 %v61, 1e-06
    %v64 = vadd.f32 %v62, 1e-06
    %v65 = vrsqrt.pop %v63
    %v66 = vmul.f32 %v65, %v63
    %v67 = vmul.f32 %v66, %v65
    %v68 = vmul.f32 0.5, %v67
    %v69 = vsub.f32 1.5, %v68
    %v70 = vmul.f32 %v65, %v69
    %vm71 = vweird.f32 %v63
    %vm72 = vweird.f32 %v65
    %vm73 = vmor %vm71, %vm72
    %v74 = vsel %vm73, %v65, %v70
    %v75 = vrsqrt.pop %v64
    %v76 = vmul.f32 %v75, %v64
    %v77 = vmul.f32 %v76, %v75
    %v78 = vmul.f32 0.5, %v77
    %v79 = vsub.f32 1.5, %v78
    %v80 = vmul.f32 %v75, %v79
    %vm81 = vweird.f32 %v64
    %vm82 = vweird.f32 %v75
    %vm83 = vmor %vm81, %vm82
    %v84 = vsel %vm83, %v75, %v80
    %v85 = vmul.f32 %v43, %v74
    %v86 = vmul.f32 %v44, %v84
    %v88 = vperm.slane %v42, 0
    %v90 = vmul.f32 %v85, %v88
    %v91 = vmul.f32 %v86, %v88
    %92 = vst.msk [vmem:[#allocation7] sm:$0xff] %vm47, %v90
    %93 = vst.msk [vmem:[#allocation7 + $0x8] sm:$0xff] %vm47, %v91
    // Predicated region
    $region18: #{tpu_custom_call.1} parent=1 // pred_check
      _
    $region19: #{tpu_custom_call.1} parent=1 // pred_check_branch
      %95 = sbr.rel (0) target = $region21
    $region20: #{tpu_custom_call.1} parent=1 // pred_region
      %97 = vsyncadd [#allocation4], 0
      %s98 = sshll.u32 [#allocation7], 4
      %s99 = int_to_ptr.vmem [resolvable:$true] %s98
      %s100 = sshll.u32 %s2, 4
      %s101 = int_to_ptr.hbm [resolvable:$true] %s100
      %106 = dma.vmem_to_hbm [thread:$0]  %s99, 256, %s101, [#allocation4], 128, 128, 8
    $region21: #{tpu_custom_call.1} parent=1 // pred_fallthru
      _
    // Predicated region
    $region22: #{tpu_custom_call.1} parent=1 // pred_check
      _
    $region23: #{tpu_custom_call.1} parent=1 // pred_check_branch
      %108 = sbr.rel (0) target = $region25
    $region24: #{tpu_custom_call.1} parent=1 // pred_region
      %110 = dma.done [#allocation4], 256
    $region25: #{tpu_custom_call.1} parent=1 // pred_fallthru
      _
    %111 = vsyncpa [#allocation3], 1
    %112 = vsyncpa [#allocation6], 1
    %113 = vsyncpa [#allocation4], 1

</llo_original>
